<compile_context>
chip_gen: v5e
topology: v5e:2x2
jax: 0.10.0
libtpu: 0.0.40
codegen_flags: <defaults>
</compile_context>

<pallas_src>
import functools

import numpy as np
import jax
import jax.numpy as jnp
from jax.experimental import pallas as pl
from jax.experimental.pallas import tpu as pltpu


# ----------------------------------------------------------------------------
# Pallas kernel 1: masked cross-entropy, NCHW-native, pixels in lanes
# ----------------------------------------------------------------------------
def _ce_kernel(logits_ref, tgt_ref, sum_ref, cnt_ref, acc_sum, acc_cnt, *,
               num_classes, smoothing, ignore_index):
    p = pl.program_id(1)

    @pl.when(p == 0)
    def _():
        acc_sum[...] = jnp.zeros_like(acc_sum)
        acc_cnt[...] = jnp.zeros_like(acc_cnt)

    x = logits_ref[0].astype(jnp.float32)                 # (C, T): pixels in lanes
    tgt = tgt_ref[0]                                      # (1, T) int32

    # log-softmax over the class (sublane) axis
    m = jnp.max(x, axis=0, keepdims=True)                 # (1, T)
    lse = jnp.log(jnp.sum(jnp.exp(x - m), axis=0, keepdims=True)) + m
    logp = x - lse                                        # (C, T)

    # in-kernel one-hot pick (no one_hot stream from HBM)
    cls = jax.lax.broadcasted_iota(jnp.int32, logp.shape, 0)
    pick = (cls == tgt).astype(jnp.float32)               # (C, T)
    logp_t = jnp.sum(logp * pick, axis=0, keepdims=True)  # (1, T)

    if smoothing:
        eps = 0.1
        sum_lp = jnp.sum(logp, axis=0, keepdims=True)
        per_pix = -((1.0 - eps) * logp_t
                    + (eps / (num_classes - 1)) * (sum_lp - logp_t))
    else:
        per_pix = -logp_t

    valid = (tgt != ignore_index).astype(jnp.float32)     # (1, T), in-kernel mask
    acc_sum[...] += per_pix * valid                       # per-lane accumulation
    acc_cnt[...] += valid

    @pl.when(p == pl.num_programs(1) - 1)
    def _():
        sum_ref[...] = jnp.sum(acc_sum[...], axis=1, keepdims=True)[None]
        cnt_ref[...] = jnp.sum(acc_cnt[...], axis=1, keepdims=True)[None]


def ce_loss_pallas(logits, target, num_classes, smoothing, ignore_index=255):
    """logits: (B, C, H, W), target: (B, H, W) int.  Returns scalar loss."""
    B, C, H, W = logits.shape
    HW = H * W
    x = logits.reshape(B, C, HW)                 # free: NCHW -> (B, C, HW)
    tgt = target.reshape(B, 1, HW).astype(jnp.int32)

    # prefer a lane tile that divides HW (no padding pass); else pad minimally.
    TILE = next((t for t in (2048, 1024, 512, 256, 128) if HW % t == 0), None)
    if TILE is None:
        TILE = min(2048, ((HW + 127) // 128) * 128)
    pad = (-HW) % TILE
    if pad:
        x = jnp.pad(x, ((0, 0), (0, 0), (0, pad)))
        tgt = jnp.pad(tgt, ((0, 0), (0, 0), (0, pad)),
                      constant_values=ignore_index)       # padded pixels -> ignored
    HWp = HW + pad
    n_pix_tiles = HWp // TILE

    kernel = functools.partial(_ce_kernel, num_classes=num_classes,
                               smoothing=bool(smoothing),
                               ignore_index=ignore_index)
    sums, cnts = pl.pallas_call(
        kernel,
        out_shape=(jax.ShapeDtypeStruct((B, 1, 1), jnp.float32),
                   jax.ShapeDtypeStruct((B, 1, 1), jnp.float32)),
        grid_spec=pltpu.PrefetchScalarGridSpec(
            num_scalar_prefetch=0,
            grid=(B, n_pix_tiles),
            in_specs=[pl.BlockSpec((1, C, TILE), lambda b, p: (b, 0, p)),
                      pl.BlockSpec((1, 1, TILE), lambda b, p: (b, 0, p))],
            out_specs=[pl.BlockSpec((1, 1, 1), lambda b, p: (b, 0, 0)),
                       pl.BlockSpec((1, 1, 1), lambda b, p: (b, 0, 0))],
            scratch_shapes=[pltpu.VMEM((1, TILE), jnp.float32),
                            pltpu.VMEM((1, TILE), jnp.float32)]),
        compiler_params=pltpu.CompilerParams(
            dimension_semantics=("parallel", "arbitrary")),
    )(x, tgt)
    total = jnp.sum(sums)
    cnt = jnp.maximum(jnp.sum(cnts), 1.0)        # guard: all pixels ignored
    return total / cnt


# ----------------------------------------------------------------------------
# Pallas kernel 2: supervised pixel-contrastive loss (row-tiled N x N problem)
# ----------------------------------------------------------------------------
def _contrast_kernel(frow_ref, fcol_ref, labr_ref, labc_ref, out_ref, *,
                     inv_temp, tile_r, bg_anchor):
    r0 = pl.program_id(0) * tile_r
    # fold 1/temperature into the row operand (TILE_R*D muls instead of N^2)
    a = frow_ref[...].astype(jnp.float32) * inv_temp       # (TR, Dp)
    b = fcol_ref[...].astype(jnp.float32)                  # (N,  Dp)
    adc = jax.lax.dot_general(a, b, (((1,), (1,)), ((), ())),
                              preferred_element_type=jnp.float32)  # (TR, N)
    row_max = jnp.max(adc, axis=1, keepdims=True)
    logits = adc - row_max

    labr = labr_ref[...]                                   # (TR, 1) f32
    labc = labc_ref[...]                                   # (1,  N) f32
    same = labr == labc                                    # bool (TR, N)
    rows = r0 + jax.lax.broadcasted_iota(jnp.int32, logits.shape, 0)
    cols = jax.lax.broadcasted_iota(jnp.int32, logits.shape, 1)
    pos = jnp.logical_and(same, rows != cols)              # positives excl. self

    e = jnp.exp(logits)
    neg_sum = jnp.sum(jnp.where(same, 0.0, e), axis=1, keepdims=True)
    # underflow guard keeps log finite even for pathological inputs
    log_prob = logits - jnp.log(jnp.maximum(e + neg_sum, 1e-30))

    posf = pos.astype(jnp.float32)
    pos_cnt = jnp.sum(posf, axis=1, keepdims=True)
    pos_sum = jnp.sum(jnp.where(pos, log_prob, 0.0), axis=1, keepdims=True)
    # NOTE: pl.reciprocal(approx=True) is a free EUP win on HW; plain divide is
    # kept here for interpret-mode safety (negligible at this size).
    mean_raw = pos_sum / jnp.maximum(pos_cnt, 1.0)

    row_ok = pos_cnt > 0.0                                 # guards NaN (no positives)
    if not bg_anchor:
        row_ok = jnp.logical_and(row_ok, labr != 0.0)
    mean_lpp = jnp.where(row_ok, mean_raw, 0.0)            # (TR, 1); pad rows -> 0
    out_ref[...] = jnp.sum(mean_lpp, axis=0, keepdims=True)[None]


def contrastive_pallas(feats_, labels_, temperature, base_temperature,
                       bg_anchor=True):
    """feats_: (A, V, D) f32, labels_: (A,) f32.  Returns scalar loss."""
    A, V, D = feats_.shape
    N = A * V
    # torch.cat(torch.unbind(feats_, dim=1), dim=0) == transpose(0,1).reshape
    F_ = jnp.transpose(feats_, (1, 0, 2)).reshape(N, D).astype(jnp.float32)
    labs = jnp.tile(labels_.astype(jnp.float32), V)        # row i -> labels_[i % A]

    # zero-pad feature dim to an MXU-friendly multiple of 128 (exact math)
    Dp = max(128, ((D + 127) // 128) * 128)
    if Dp != D:
        F_ = jnp.pad(F_, ((0, 0), (0, Dp - D)))

    # row tiling bounds VMEM to TILE_R x N temporaries and enables 2-TC sharding
    TILE_R = min(N, 256)
    n_pad = (-N) % TILE_R
    F_rows = jnp.pad(F_, ((0, n_pad), (0, 0)))
    lab_r = jnp.pad(labs, (0, n_pad), constant_values=-1.0).reshape(N + n_pad, 1)
    lab_c = labs.reshape(1, N)                              # columns never padded
    n_tiles = (N + n_pad) // TILE_R

    kernel = functools.partial(_contrast_kernel,
                               inv_temp=float(1.0 / temperature),
                               tile_r=TILE_R, bg_anchor=bool(bg_anchor))
    partials = pl.pallas_call(
        kernel,
        out_shape=jax.ShapeDtypeStruct((n_tiles, 1, 1), jnp.float32),
        grid_spec=pltpu.PrefetchScalarGridSpec(
            num_scalar_prefetch=0,
            grid=(n_tiles,),
            in_specs=[pl.BlockSpec((TILE_R, Dp), lambda i: (i, 0)),
                      pl.BlockSpec((N, Dp), lambda i: (0, 0)),
                      pl.BlockSpec((TILE_R, 1), lambda i: (i, 0)),
                      pl.BlockSpec((1, N), lambda i: (0, 0))],
            out_specs=pl.BlockSpec((1, 1, 1), lambda i: (i, 0, 0))),
        compiler_params=pltpu.CompilerParams(
            dimension_semantics=("parallel",)),
    )(F_rows, F_, lab_r, lab_c)

    total = jnp.sum(partials)
    if bg_anchor:
        denom = jnp.float32(N)
    else:
        denom = jnp.maximum(jnp.sum((labs != 0.0).astype(jnp.float32)), 1.0)
    return -(temperature / base_temperature) * total / denom


# ----------------------------------------------------------------------------
# Plain-JAX / numpy glue
# ----------------------------------------------------------------------------
def resize_nearest_nchw(x, out_h, out_w):
    """torch F.interpolate(mode='nearest') on NCHW."""
    B, C, H, W = x.shape
    if out_h == H and out_w == W:
        return x
    ih = jnp.floor(jnp.arange(out_h) * (H / out_h)).astype(jnp.int32)
    iw = jnp.floor(jnp.arange(out_w) * (W / out_w)).astype(jnp.int32)
    return x[:, :, ih[:, None], iw[None, :]]


def resize_bilinear_align_corners_nchw(x, out_h, out_w):
    """torch F.interpolate(mode='bilinear', align_corners=True) on NCHW."""
    B, C, H, W = x.shape
    if out_h == H and out_w == W:
        return x
    ys = jnp.linspace(0.0, H - 1.0, out_h)
    xs = jnp.linspace(0.0, W - 1.0, out_w)
    y0 = jnp.floor(ys).astype(jnp.int32)
    x0 = jnp.floor(xs).astype(jnp.int32)
    y1 = jnp.minimum(y0 + 1, H - 1)
    x1 = jnp.minimum(x0 + 1, W - 1)
    wy = (ys - y0)[None, None, :, None]
    wx = (xs - x0)[None, None, None, :]
    g = lambda yi, xi: x[:, :, yi[:, None], xi[None, :]]
    top = g(y0, x0) * (1.0 - wx) + g(y0, x1) * wx
    bot = g(y1, x0) * (1.0 - wx) + g(y1, x1) * wx
    return top * (1.0 - wy) + bot * wy


def hard_anchor_sampling_np(X, y_hat, y, max_samples, max_views,
                            ignore_label=255, seed=0):
    """Data-dependent sampling (torch.unique / nonzero / randperm) on host."""
    # TODO(synk): data-dependent shapes + randperm have no clean Pallas equivalent;
    #             this stays as host-side numpy glue (device->host sync per call).
    rng = np.random.default_rng(seed)
    B, HW, D = X.shape
    classes, total = [], 0
    for ii in range(B):
        ty = y_hat[ii]
        cls = [int(c) for c in np.unique(ty)
               if c != ignore_label and int((ty == c).sum()) > max_views]
        classes.append(cls)
        total += len(cls)
    if total == 0:
        return None, None
    n_view = min(max_samples // total, max_views)
    if n_view == 0:          # guard: more classes than max_samples allows
        return None, None
    X_ = np.zeros((total, n_view, D), np.float32)
    y_ = np.zeros((total,), np.float32)
    ptr = 0
    for ii in range(B):
        ty_hat, ty = y_hat[ii], y[ii]
        for c in classes[ii]:
            hard = np.nonzero((ty_hat == c) & (ty != c))[0]
            easy = np.nonzero((ty_hat == c) & (ty == c))[0]
            nh, ne = len(hard), len(easy)
            if nh >= n_view / 2 and ne >= n_view / 2:
                nhk = n_view // 2
                nek = n_view - nhk
            elif nh >= n_view / 2:
                nek = ne
                nhk = n_view - nek
            elif ne >= n_view / 2:
                nhk = nh
                nek = n_view - nhk
            else:
                raise RuntimeError("insufficient samples for class %d" % c)
            hard = hard[rng.permutation(nh)[:nhk]]
            easy = easy[rng.permutation(ne)[:nek]]
            idx = np.concatenate([hard, easy], axis=0)
            X_[ptr] = X[ii, idx, :]
            y_[ptr] = c
            ptr += 1
    return X_, y_


def pixel_contrast_loss(args, feats, labels, predict):
    """feats: (B, D, Hf, Wf), labels: (B, H, W) int, predict: (B, Hf, Wf) int."""
    B, D, Hf, Wf = feats.shape
    lab = resize_nearest_nchw(labels[:, None, :, :].astype(jnp.float32), Hf, Wf)
    lab = lab[:, 0].astype(jnp.int32).reshape(B, -1)
    pred = predict.reshape(B, -1)
    X = jnp.transpose(feats, (0, 2, 3, 1)).reshape(B, -1, D)

    feats_, labels_ = hard_anchor_sampling_np(
        np.asarray(X), np.asarray(lab), np.asarray(pred),
        args["max_samples"], args["max_views"], ignore_label=255, seed=0)
    if feats_ is None:
        return jnp.float32(0.0)
    return contrastive_pallas(jnp.asarray(feats_), jnp.asarray(labels_),
                              args["temperature"], args["base_temperature"],
                              bg_anchor=args.get("bg_anchor", True))


def contrast_ce_loss(args, logits, target, embedding=None):
    """Forward pass of ContrastCELoss (args supplied as a dict)."""
    loss = ce_loss_pallas(logits, target, args["num_classes_tr"], args["smoothing"])
    if embedding is not None:
        h, w = embedding.shape[-2], embedding.shape[-1]
        pred_logits = resize_bilinear_align_corners_nchw(logits, h, w)
        pred = jnp.argmax(pred_logits, axis=1)
        loss_contrast = pixel_contrast_loss(args, embedding, target, pred)
        loss = loss + args["loss_weight"] * loss_contrast
    return loss


# ----------------------------------------------------------------------------
if __name__ == "__main__":
    key = jax.random.PRNGKey(0)
    B, C, H, W = 2, 4, 16, 16     # batch, num_classes, spatial
    D = 32                        # embedding feature dim

    args = dict(
        num_classes_tr=C,
        loss_weight=0.1,
        smoothing=False,
        bg_anchor=True,
        temperature=0.1,
        base_temperature=0.07,
        max_samples=128,
        max_views=16,
    )

    k1, k2, k3 = jax.random.split(key, 3)
    logits = jax.random.normal(k1, (B, C, H, W), jnp.float32)
    target = jax.random.randint(k2, (B, H, W), 0, C).astype(jnp.int32)
    target = target.at[0, 0, :4].set(255)   # a few ignore_index pixels
    embedding = jax.random.normal(k3, (B, D, H, W), jnp.float32)
    # L2-normalize embeddings along the feature dim (standard for contrastive
    # projection heads); keeps dot/temperature in a sane numeric range.
    embedding = embedding / (jnp.linalg.norm(embedding, axis=1, keepdims=True) + 1e-12)

    loss = contrast_ce_loss(args, logits, target, embedding)
    loss = jax.block_until_ready(loss)
    assert np.isfinite(float(loss))
    print("KERNEL_OK")
</pallas_src>

<mosaic_0001>
module attributes {stable_mosaic.version = 11 : i64} {
  func.func @_ce_kernel(%arg0: i32, %arg1: i32, %arg2: memref<1x4x256xf32, #tpu.memory_space<vmem>>, %arg3: memref<1x1x256xi32, #tpu.memory_space<vmem>>, %arg4: memref<1x1x1xf32, #tpu.memory_space<vmem>>, %arg5: memref<1x1x1xf32, #tpu.memory_space<vmem>>, %arg6: memref<1x256xf32, #tpu.memory_space<vmem>>, %arg7: memref<1x256xf32, #tpu.memory_space<vmem>>) attributes {dimension_semantics = [#tpu.dimension_semantics<parallel>, #tpu.dimension_semantics<arbitrary>], iteration_bounds = array<i64: 2, 1>, scalar_prefetch = 0 : i64, scratch_operands = 2 : i64, tpu.core_type = #tpu.core_type<tc>, window_params = [{transform_indices = @transform_0, window_bounds = array<i64: 1, 4, 256>}, {transform_indices = @transform_1, window_bounds = array<i64: 1, 1, 256>}, {transform_indices = @transform_2, window_bounds = array<i64: 1, 1, 1>}, {transform_indices = @transform_3, window_bounds = array<i64: 1, 1, 1>}]} {
    %c0_i32 = arith.constant 0 : i32
    %0 = arith.cmpi eq, %arg1, %c0_i32 : i32
    %1 = arith.extui %0 : i1 to i32
    %c0_i32_0 = arith.constant 0 : i32
    %2 = arith.cmpi ne, %1, %c0_i32_0 : i32
    scf.if %2 {
      %cst_19 = arith.constant 0.000000e+00 : f32
      %42 = vector.broadcast %cst_19 : f32 to vector<1x256xf32>
      %c0_20 = arith.constant 0 : index
      %c0_21 = arith.constant 0 : index
      %43 = vector.load %arg6[%c0_20, %c0_21] : memref<1x256xf32, #tpu.memory_space<vmem>>, vector<1x256xf32>
      tpu.vector_store %arg6[%c0_20, %c0_21], %42 {strides = array<i32>} : memref<1x256xf32, #tpu.memory_space<vmem>>, vector<1x256xf32>,
      %cst_22 = arith.constant 0.000000e+00 : f32
      %44 = vector.broadcast %cst_22 : f32 to vector<1x256xf32>
      %c0_23 = arith.constant 0 : index
      %c0_24 = arith.constant 0 : index
      %45 = vector.load %arg7[%c0_23, %c0_24] : memref<1x256xf32, #tpu.memory_space<vmem>>, vector<1x256xf32>
      tpu.vector_store %arg7[%c0_23, %c0_24], %44 {strides = array<i32>} : memref<1x256xf32, #tpu.memory_space<vmem>>, vector<1x256xf32>,
    } else {
    }
    %c0 = arith.constant 0 : index
    %c0_1 = arith.constant 0 : index
    %c0_2 = arith.constant 0 : index
    %3 = vector.load %arg2[%c0, %c0_1, %c0_2] : memref<1x4x256xf32, #tpu.memory_space<vmem>>, vector<1x4x256xf32>
    %4 = vector.shape_cast %3 : vector<1x4x256xf32> to vector<4x256xf32>
    %c0_3 = arith.constant 0 : index
    %c0_4 = arith.constant 0 : index
    %c0_5 = arith.constant 0 : index
    %5 = vector.load %arg3[%c0_3, %c0_4, %c0_5] : memref<1x1x256xi32, #tpu.memory_space<vmem>>, vector<1x1x256xi32>
    %6 = vector.shape_cast %5 : vector<1x1x256xi32> to vector<1x256xi32>
    %cst = arith.constant dense<0xFF800000> : vector<256xf32>
    %7 = vector.multi_reduction <maximumf>, %4, %cst [0] : vector<4x256xf32> to vector<256xf32>
    %8 = vector.shape_cast %7 : vector<256xf32> to vector<1x256xf32>
    %9 = vector.broadcast %8 : vector<1x256xf32> to vector<4x256xf32>
    %10 = arith.subf %4, %9 : vector<4x256xf32>
    %11 = math.exp %10 : vector<4x256xf32>
    %cst_6 = arith.constant dense<0.000000e+00> : vector<256xf32>
    %12 = vector.multi_reduction <add>, %11, %cst_6 [0] : vector<4x256xf32> to vector<256xf32>
    %13 = vector.shape_cast %12 : vector<256xf32> to vector<1x256xf32>
    %14 = math.log %13 : vector<1x256xf32>
    %15 = arith.addf %14, %8 : vector<1x256xf32>
    %16 = vector.broadcast %15 : vector<1x256xf32> to vector<4x256xf32>
    %17 = arith.subf %4, %16 : vector<4x256xf32>
    %18 = tpu.iota {dimensions = array<i32: 0>} : vector<4x256xi32>
    %19 = vector.broadcast %6 : vector<1x256xi32> to vector<4x256xi32>
    %20 = arith.cmpi eq, %18, %19 : vector<4x256xi32>
    %21 = arith.extui %20 : vector<4x256xi1> to vector<4x256xi32>
    %22 = arith.sitofp %21 : vector<4x256xi32> to vector<4x256xf32>
    %23 = arith.mulf %17, %22 : vector<4x256xf32>
    %cst_7 = arith.constant dense<0.000000e+00> : vector<256xf32>
    %24 = vector.multi_reduction <add>, %23, %cst_7 [0] : vector<4x256xf32> to vector<256xf32>
    %25 = vector.shape_cast %24 : vector<256xf32> to vector<1x256xf32>
    %cst_8 = arith.constant 0.000000e+00 : f32
    %26 = vector.broadcast %cst_8 : f32 to vector<1x256xf32>
    %27 = arith.subf %26, %25 : vector<1x256xf32>
    %c255_i32 = arith.constant 255 : i32
    %28 = vector.broadcast %c255_i32 : i32 to vector<1x256xi32>
    %29 = arith.cmpi ne, %6, %28 : vector<1x256xi32>
    %30 = arith.extui %29 : vector<1x256xi1> to vector<1x256xi32>
    %31 = arith.sitofp %30 : vector<1x256xi32> to vector<1x256xf32>
    %c0_9 = arith.constant 0 : index
    %c0_10 = arith.constant 0 : index
    %32 = vector.load %arg6[%c0_9, %c0_10] : memref<1x256xf32, #tpu.memory_space<vmem>>, vector<1x256xf32>
    %33 = arith.mulf %27, %31 : vector<1x256xf32>
    %34 = arith.addf %32, %33 : vector<1x256xf32>
    %c0_11 = arith.constant 0 : index
    %c0_12 = arith.constant 0 : index
    %35 = vector.load %arg6[%c0_11, %c0_12] : memref<1x256xf32, #tpu.memory_space<vmem>>, vector<1x256xf32>
    tpu.vector_store %arg6[%c0_11, %c0_12], %34 {strides = array<i32>} : memref<1x256xf32, #tpu.memory_space<vmem>>, vector<1x256xf32>,
    %c0_13 = arith.constant 0 : index
    %c0_14 = arith.constant 0 : index
    %36 = vector.load %arg7[%c0_13, %c0_14] : memref<1x256xf32, #tpu.memory_space<vmem>>, vector<1x256xf32>
    %37 = arith.addf %36, %31 : vector<1x256xf32>
    %c0_15 = arith.constant 0 : index
    %c0_16 = arith.constant 0 : index
    %38 = vector.load %arg7[%c0_15, %c0_16] : memref<1x256xf32, #tpu.memory_space<vmem>>, vector<1x256xf32>
    tpu.vector_store %arg7[%c0_15, %c0_16], %37 {strides = array<i32>} : memref<1x256xf32, #tpu.memory_space<vmem>>, vector<1x256xf32>,
    %c0_i32_17 = arith.constant 0 : i32
    %39 = arith.cmpi eq, %arg1, %c0_i32_17 : i32
    %40 = arith.extui %39 : i1 to i32
    %c0_i32_18 = arith.constant 0 : i32
    %41 = arith.cmpi ne, %40, %c0_i32_18 : i32
    scf.if %41 {
      %c0_19 = arith.constant 0 : index
      %c0_20 = arith.constant 0 : index
      %42 = vector.load %arg6[%c0_19, %c0_20] : memref<1x256xf32, #tpu.memory_space<vmem>>, vector<1x256xf32>
      %cst_21 = arith.constant dense<0.000000e+00> : vector<1xf32>
      %43 = vector.multi_reduction <add>, %42, %cst_21 [1] : vector<1x256xf32> to vector<1xf32>
      %44 = vector.shape_cast %43 : vector<1xf32> to vector<1x1xf32>
      %45 = vector.shape_cast %44 : vector<1x1xf32> to vector<1x1x1xf32>
      %c0_22 = arith.constant 0 : index
      %c0_23 = arith.constant 0 : index
      %c0_24 = arith.constant 0 : index
      %46 = vector.load %arg4[%c0_22, %c0_23, %c0_24] : memref<1x1x1xf32, #tpu.memory_space<vmem>>, vector<1x1x1xf32>
      tpu.vector_store %arg4[%c0_22, %c0_23, %c0_24], %45 {strides = array<i32>} : memref<1x1x1xf32, #tpu.memory_space<vmem>>, vector<1x1x1xf32>,
      %c0_25 = arith.constant 0 : index
      %c0_26 = arith.constant 0 : index
      %47 = vector.load %arg7[%c0_25, %c0_26] : memref<1x256xf32, #tpu.memory_space<vmem>>, vector<1x256xf32>
      %cst_27 = arith.constant dense<0.000000e+00> : vector<1xf32>
      %48 = vector.multi_reduction <add>, %47, %cst_27 [1] : vector<1x256xf32> to vector<1xf32>
      %49 = vector.shape_cast %48 : vector<1xf32> to vector<1x1xf32>
      %50 = vector.shape_cast %49 : vector<1x1xf32> to vector<1x1x1xf32>
      %c0_28 = arith.constant 0 : index
      %c0_29 = arith.constant 0 : index
      %c0_30 = arith.constant 0 : index
      %51 = vector.load %arg5[%c0_28, %c0_29, %c0_30] : memref<1x1x1xf32, #tpu.memory_space<vmem>>, vector<1x1x1xf32>
      tpu.vector_store %arg5[%c0_28, %c0_29, %c0_30], %50 {strides = array<i32>} : memref<1x1x1xf32, #tpu.memory_space<vmem>>, vector<1x1x1xf32>,
    } else {
    }
    return
  }
  func.func @transform_0(%arg0: i32, %arg1: i32) -> (i32, i32, i32) {
    %c0_i32 = arith.constant 0 : i32
    %c0_i32_0 = arith.constant 0 : i32
    return %arg0, %c0_i32, %arg1 : i32, i32, i32
  }
  func.func @transform_1(%arg0: i32, %arg1: i32) -> (i32, i32, i32) {
    %c0_i32 = arith.constant 0 : i32
    %c0_i32_0 = arith.constant 0 : i32
    return %arg0, %c0_i32, %arg1 : i32, i32, i32
  }
  func.func @transform_2(%arg0: i32, %arg1: i32) -> (i32, i32, i32) {
    %c0_i32 = arith.constant 0 : i32
    %c0_i32_0 = arith.constant 0 : i32
    %c0_i32_1 = arith.constant 0 : i32
    return %arg0, %c0_i32, %c0_i32_0 : i32, i32, i32
  }
  func.func @transform_3(%arg0: i32, %arg1: i32) -> (i32, i32, i32) {
    %c0_i32 = arith.constant 0 : i32
    %c0_i32_0 = arith.constant 0 : i32
    %c0_i32_1 = arith.constant 0 : i32
    return %arg0, %c0_i32, %c0_i32_0 : i32, i32, i32
  }
}

</mosaic_0001>

<llo_original>
// kernel: tpu_custom_call.1
$region0: #{tpu_custom_call.1}
  #allocation0 [shape = 'u32[]', space=smem, size = 0x4, offset = 0x4, fixed_abs, tag = 'smem constant byte address 0x4 - core index']
  #allocation1 [shape = 'u32[72,128]{1,0:T(1,128)}', space=vmem, size = 0x9000, scoped, tag = 'internal scratch']
  #allocation2 [shape = 'f32[1,256]{1,0:T(1,128)}', space=vmem, size = 0x400, scoped, tag = 'scratch operand']
  #allocation3 [shape = 'f32[1,256]{1,0:T(1,128)}', space=vmem, size = 0x400, scoped, tag = 'scratch operand']
  %s0 = inlined_call_operand.hbm [shape: f32[2,4,256], index: 0, kind: input, shape index: {}]
  %s1 = inlined_call_operand.hbm [shape: s32[2,1,256], index: 1, kind: input, shape index: {}]
  %s2 = inlined_call_operand.vmem [shape: f32[2,1,1], index: 2, kind: output, shape index: {0}]
  %s3 = inlined_call_operand.vmem [shape: f32[2,1,1], index: 3, kind: output, shape index: {1}]
  %4 = xla_tuple %s2, %s3
  %s5 = sld [smem:[#allocation0]]
  $region65: #{tpu_custom_call.1} parent=0
    _
  %s7 = ssub.s32 1, %s5
  %s8 = scalar_select 0, %s7, %s5
  $region1: #{tpu_custom_call.1} parent=0
    #allocation4 [shape = 'u8[8192]{0}', space=vmem, size = 0x2000, scoped, tag = 'input window, operand 0']
    #allocation5 [shape = 's32[2]{0}', space=sflag, size = 0x8, scoped, tag = 'scoped memory for tpu_custom_call.1']
    #allocation6 [shape = 'u8[2048]{0}', space=vmem, size = 0x800, scoped, tag = 'input window, operand 1']
    #allocation7 [shape = 's32[2]{0}', space=sflag, size = 0x8, scoped, tag = 'scoped memory for tpu_custom_call.1']
    %9 = vsyncpa [#allocation5], 0
    %s10 = scalar_lea.sflag [#allocation5], 1
    %11 = vsyncpa %s10, 0
    %12 = vsyncpa [#allocation7], 0
    %s13 = scalar_lea.sflag [#allocation7], 1
    %14 = vsyncpa %s13, 0
    loop: start=0, step=1, limit=4
    $region2: #{tpu_custom_call.1} parent=1 // loop_pre_header
      _
    $region3: #{tpu_custom_call.1} parent=1 // loop_header
      %s16 = sphi 0, %s20
      %p17 = scmp.ge.s32.totalorder %s16, 4
      %s23 = sphi 0, %s35
      %s24 = sphi 0, %s31
      %s25 = sphi 0, %s23
      %s26 = sphi 0, %s24
      %s27 = sphi 0, %s25
      %s28 = sphi 0, %s26
      %s40 = sphi 0, %s42
      %s43 = sphi 0, %s40
      %s44 = sphi 0, %s43
      %s60 = sphi 0, %s44
      %s68 = sphi 0, %s70
      %s71 = sphi 0, %s68
      %s72 = sphi 0, %s71
      %s88 = sphi 0, %s72
      %s94 = sphi 0, %s96
      %s97 = sphi 0, %s94
      %s98 = sphi 0, %s97
      %s114 = sphi 0, %s98
      %s120 = sphi 0, %s122
      %s123 = sphi 0, %s120
      %s124 = sphi 0, %s123
      %s140 = sphi 0, %s124
    $region4: #{tpu_custom_call.1} parent=1 // loop_header_branch
      %19 = sbr.rel (%p17) target = $region8
    $region5: #{tpu_custom_call.1} parent=1 // loop_body
      %s21 = ssub.s32 %s16, 1
      %s22 = ssub.s32 %s16, 2
      %s29 = sadd.s32 1, %s24
      %p30 = scmp.ge.s32.totalorder %s29, 1
      %s31 = scalar_select %p30, 0, %s29
      %s32 = sadd.s32 1, %s23
      %s33 = scalar_select %p30, %s32, %s23
      %p34 = scmp.ge.s32.totalorder %s33, 2
      %s35 = scalar_select %p34, 0, %s33
      %s36 = ssub.s32 %s23, %s35
      %s37 = ssub.s32 %s24, %s31
      %s38 = sor.u32 %s36, %s37
      %p39 = scmp.eq.s32.totalorder %s38, 0
      %s41 = sadd.s32 %s40, 1
      %s42 = scalar_select %p39, %s40, %s41
      %p45 = pneg %p39
      %p46 = scmp.eq.s32.totalorder %s16, 1
      %p47 = por %p45, %p46
      %p48 = scmp.ne.s32.totalorder %s40, %s43
      %p49 = scmp.eq.s32.totalorder %s16, 0
      %p50 = por %p48, %p49
      %p51 = scmp.ne.s32.totalorder %s40, %s43
      %p52 = scmp.eq.s32.totalorder %s21, 1
      %p53 = por %p51, %p52
      %p54 = scmp.ne.s32.totalorder %s43, %s44
      %p55 = scmp.eq.s32.totalorder %s21, 0
      %p56 = por %p54, %p55
      %p57 = scmp.ne.s32.totalorder %s43, %s44
      %p58 = scmp.eq.s32.totalorder %s22, 1
      %p59 = por %p57, %p58
      %p61 = scmp.ne.s32.totalorder %s44, %s60
      %p62 = scmp.eq.s32.totalorder %s22, 0
      %p63 = por %p61, %p62
      %s64 = ssub.s32 %s23, %s35
      %s65 = ssub.s32 %s24, %s31
      %s66 = sor.u32 %s64, %s65
      %p67 = scmp.eq.s32.totalorder %s66, 0
      %s69 = sadd.s32 %s68, 1
      %s70 = scalar_select %p67, %s68, %s69
      %p73 = pneg %p67
      %p74 = scmp.eq.s32.totalorder %s16, 1
      %p75 = por %p73, %p74
      %p76 = scmp.ne.s32.totalorder %s68, %s71
      %p77 = scmp.eq.s32.totalorder %s16, 0
      %p78 = por %p76, %p77
      %p79 = scmp.ne.s32.totalorder %s68, %s71
      %p80 = scmp.eq.s32.totalorder %s21, 1
      %p81 = por %p79, %p80
      %p82 = scmp.ne.s32.totalorder %s71, %s72
      %p83 = scmp.eq.s32.totalorder %s21, 0
      %p84 = por %p82, %p83
      %p85 = scmp.ne.s32.totalorder %s71, %s72
      %p86 = scmp.eq.s32.totalorder %s22, 1
      %p87 = por %p85, %p86
      %p89 = scmp.ne.s32.totalorder %s72, %s88
      %p90 = scmp.eq.s32.totalorder %s22, 0
      %p91 = por %p89, %p90
      %s92 = ssub.s32 %s23, %s35
      %p93 = scmp.eq.s32.totalorder %s92, 0
      %s95 = sadd.s32 %s94, 1
      %s96 = scalar_select %p93, %s94, %s95
      %p99 = pneg %p93
      %p100 = scmp.eq.s32.totalorder %s16, 1
      %p101 = por %p99, %p100
      %p102 = scmp.ne.s32.totalorder %s94, %s97
      %p103 = scmp.eq.s32.totalorder %s16, 0
      %p104 = por %p102, %p103
      %p105 = scmp.ne.s32.totalorder %s94, %s97
      %p106 = scmp.eq.s32.totalorder %s21, 1
      %p107 = por %p105, %p106
      %p108 = scmp.ne.s32.totalorder %s97, %s98
      %p109 = scmp.eq.s32.totalorder %s21, 0
      %p110 = por %p108, %p109
      %p111 = scmp.ne.s32.totalorder %s97, %s98
      %p112 = scmp.eq.s32.totalorder %s22, 1
      %p113 = por %p111, %p112
      %p115 = scmp.ne.s32.totalorder %s98, %s114
      %p116 = scmp.eq.s32.totalorder %s22, 0
      %p117 = por %p115, %p116
      %s118 = ssub.s32 %s23, %s35
      %p119 = scmp.eq.s32.totalorder %s118, 0
      %s121 = sadd.s32 %s120, 1
      %s122 = scalar_select %p119, %s120, %s121
      %p125 = pneg %p119
      %p126 = scmp.eq.s32.totalorder %s16, 1
      %p127 = por %p125, %p126
      %p128 = scmp.ne.s32.totalorder %s120, %s123
      %p129 = scmp.eq.s32.totalorder %s16, 0
      %p130 = por %p128, %p129
      %p131 = scmp.ne.s32.totalorder %s120, %s123
      %p132 = scmp.eq.s32.totalorder %s21, 1
      %p133 = por %p131, %p132
      %p134 = scmp.ne.s32.totalorder %s123, %s124
      %p135 = scmp.eq.s32.totalorder %s21, 0
      %p136 = por %p134, %p135
      %p137 = scmp.ne.s32.totalorder %s123, %s124
      %p138 = scmp.eq.s32.totalorder %s22, 1
      %p139 = por %p137, %p138
      %p141 = scmp.ne.s32.totalorder %s124, %s140
      %p142 = scmp.eq.s32.totalorder %s22, 0
      %p143 = por %p141, %p142
      %p144 = scmp.le.s32.totalorder 1, %s16
      %p145 = scmp.lt.s32.totalorder %s16, 3
      %p146 = pnand %p144, %p145
      %p147 = pneg %p146
      // Predicated region
      $region9: #{tpu_custom_call.1} parent=5 // pred_check
        _
      $region10: #{tpu_custom_call.1} parent=5 // pred_check_branch
        %149 = sbr.rel (%p146) target = $region12
      $region11: #{tpu_custom_call.1} parent=5 // pred_region
        %s150 = ssub.s32 %s16, 1
      $region12: #{tpu_custom_call.1} parent=5 // pred_fallthru
        _
      %p151 = scmp.lt.s32.totalorder %s16, 2
      // Predicated region
      $region13: #{tpu_custom_call.1} parent=5 // pred_check
        %p152 = pneg %p151
      $region14: #{tpu_custom_call.1} parent=5 // pred_check_branch
        %154 = sbr.rel (%p152) target = $region16
      $region15: #{tpu_custom_call.1} parent=5 // pred_region
        // Predicated region
        $region17: #{tpu_custom_call.1} parent=15 // pred_check
          %p155 = pneg %p50
        $region18: #{tpu_custom_call.1} parent=15 // pred_check_branch
          %157 = sbr.rel (%p155) target = $region20
        $region19: #{tpu_custom_call.1} parent=15 // pred_region
          %s158 = sand.u32 %s40, 1
          %s159 = scalar_lea.sflag [#allocation5], %s158
          %s160 = sand.u32 %s40, 1
          %s161 = smul.addr %s160, 8
          %s162 = scalar_lea.vmem [#allocation4], %s161
          %s163 = smul.u32 2, %s24
          %165 = vsyncadd %s159, 0
          %s166 = smul.addr %s23, 2
          %s167 = sadd.s32 %s163, %s166
          %s168 = smul.addr %s167, 4
          %s169 = scalar_lea.hbm %s0, %s168
          %s171 = sshll.u32 %s169, 4
          %s172 = int_to_ptr.hbm [resolvable:$true] %s171
          %s173 = sshll.u32 %s162, 4
          %s174 = int_to_ptr.vmem [resolvable:$true] %s173
          %176 = dma.hbm_to_vmem [thread:$0]  %s172, 128, %s174, %s159
        $region20: #{tpu_custom_call.1} parent=15 // pred_fallthru
          _
        // Predicated region
        $region21: #{tpu_custom_call.1} parent=15 // pred_check
          %p177 = pneg %p78
        $region22: #{tpu_custom_call.1} parent=15 // pred_check_branch
          %179 = sbr.rel (%p177) target = $region24
        $region23: #{tpu_custom_call.1} parent=15 // pred_region
          %s180 = sand.u32 %s68, 1
          %s181 = scalar_lea.sflag [#allocation7], %s180
          %s182 = sand.u32 %s68, 1
          %s183 = smul.addr %s182, 2
          %s184 = scalar_lea.vmem [#allocation6], %s183
          %s185 = smul.u32 2, %s24
          %187 = vsyncadd %s181, 0
          %s188 = smul.addr %s23, 2
          %s189 = sadd.s32 %s185, %s188
          %s190 = scalar_lea.hbm %s1, %s189
          %s192 = sshll.u32 %s190, 4
          %s193 = int_to_ptr.hbm [resolvable:$true] %s192
          %s194 = sshll.u32 %s184, 4
          %s195 = int_to_ptr.vmem [resolvable:$true] %s194
          %197 = dma.hbm_to_vmem [thread:$0]  %s193, 32, %s195, %s181
        $region24: #{tpu_custom_call.1} parent=15 // pred_fallthru
          _
      $region16: #{tpu_custom_call.1} parent=5 // pred_fallthru
        _
      %p198 = scmp.le.s32.totalorder 1, %s16
      %p199 = scmp.lt.s32.totalorder %s16, 3
      %p200 = pnand %p198, %p199
      %p201 = pneg %p200
      // Predicated region
      $region25: #{tpu_custom_call.1} parent=5 // pred_check
        _
      $region26: #{tpu_custom_call.1} parent=5 // pred_check_branch
        %203 = sbr.rel (%p200) target = $region28
      $region27: #{tpu_custom_call.1} parent=5 // pred_region
        %s204 = ssub.s32 %s16, 1
        %s205 = sand.u32 %s43, 1
        %s206 = scalar_lea.sflag [#allocation5], %s205
        %s207 = sand.u32 %s43, 1
        %s208 = smul.addr %s207, 8
        %s209 = scalar_lea.vmem [#allocation4], %s208
        // Predicated region
        $region29: #{tpu_custom_call.1} parent=27 // pred_check
          %p210 = pneg %p56
        $region30: #{tpu_custom_call.1} parent=27 // pred_check_branch
          %212 = sbr.rel (%p210) target = $region32
        $region31: #{tpu_custom_call.1} parent=27 // pred_region
          %214 = dma.done %s206, 128
        $region32: #{tpu_custom_call.1} parent=27 // pred_fallthru
          _
        %s215 = sand.u32 %s71, 1
        %s216 = scalar_lea.sflag [#allocation7], %s215
        %s217 = sand.u32 %s71, 1
        %s218 = smul.addr %s217, 2
        %s219 = scalar_lea.vmem [#allocation6], %s218
        // Predicated region
        $region33: #{tpu_custom_call.1} parent=27 // pred_check
          %p220 = pneg %p84
        $region34: #{tpu_custom_call.1} parent=27 // pred_check_branch
          %222 = sbr.rel (%p220) target = $region36
        $region35: #{tpu_custom_call.1} parent=27 // pred_region
          %224 = dma.done %s216, 32
        $region36: #{tpu_custom_call.1} parent=27 // pred_fallthru
          _
        %s225 = sand.u32 %s43, 1
        %s226 = scalar_lea.sflag [#allocation5], %s225
        %s227 = sand.u32 %s43, 1
        %s228 = smul.addr %s227, 8
        %s229 = scalar_lea.vmem [#allocation4], %s228
        %p230 = pneg %p56
        %p231 = pneg %p53
        %s232 = sand.u32 %s71, 1
        %s233 = scalar_lea.sflag [#allocation7], %s232
        %s234 = sand.u32 %s71, 1
        %s235 = smul.addr %s234, 2
        %s236 = scalar_lea.vmem [#allocation6], %s235
        %p237 = pneg %p84
        %p238 = pneg %p81
        %p239 = pneg %p110
        %p240 = pneg %p107
        %p241 = scmp.lt.s32.totalorder %s25, 1
        %s242 = scalar_select %p241, %s25, 1
        %s243 = scalar_lea.vmem %s2, %s242
        %p244 = pneg %p136
        %p245 = pneg %p133
        %p246 = scmp.lt.s32.totalorder %s25, 1
        %s247 = scalar_select %p246, %s25, 1
        %s248 = scalar_lea.vmem %s3, %s247
        %s249 = smul.u32 2, %s26
        %s250 = smul.u32 2, %s26
        %p251 = scmp.lt.s32.totalorder %s25, 1
        %s252 = scalar_select %p251, %s25, 1
        %s253 = scalar_lea.vmem %s2, %s252
        %p254 = scmp.lt.s32.totalorder %s25, 1
        %s255 = scalar_select %p254, %s25, 1
        %s256 = scalar_lea.vmem %s3, %s255
        %p257 = scmp.eq.s32.totalorder %s26, 0
        // Predicated region
        $region37: #{tpu_custom_call.1} parent=27 // pred_check
          %p258 = pneg %p257
        $region38: #{tpu_custom_call.1} parent=27 // pred_check_branch
          %260 = sbr.rel (%p258) target = $region40
        $region39: #{tpu_custom_call.1} parent=27 // pred_region
          %v261 = vlaneseq
          %vm262 = vcmp.ge.s32.totalorder %v261, 0
          %vm263 = vcmp.lt.s32.totalorder %v261, 256
          %vm264 = vmand %vm262, %vm263
          %265 = vst.msk [vmem:[#allocation2] sm:$0x3] %vm264, 0.0
          %266 = vst.msk [vmem:[#allocation3] sm:$0x3] %vm264, 0.0
        $region40: #{tpu_custom_call.1} parent=27 // pred_fallthru
          _
        %v267 = vld [vmem:[%s209] sm:$0xff]
        %v268 = vld [vmem:[%s219] sm:$0x3]
        %270 = vst [vmem:[#allocation1] ss:$2 sm:$0xff] %v267
        %v271 = vld.sshfl [vmem:[#allocation1] sm:$0xff pattern:$0x75316420]
        %v272 = vld.sshfl [vmem:[#allocation1 + $0x8] sm:$0xff pattern:$0x75316420]
        %vm275 = vcmask 1043456
        %v276 = vsel %vm275, %v271, -inf
        %v277 = vrot.slane %v276, 4
        %v278 = vmax.f32 %v276, %v277
        %v279 = vrot.slane %v278, 2
        %v280 = vmax.f32 %v278, %v279
        %v281 = vrot.slane %v280, 1
        %v282 = vmax.f32 %v280, %v281
        %v283 = vsel %vm275, %v272, -inf
        %v284 = vrot.slane %v283, 4
        %v285 = vmax.f32 %v283, %v284
        %v286 = vrot.slane %v285, 2
        %v287 = vmax.f32 %v285, %v286
        %v288 = vrot.slane %v287, 1
        %v289 = vmax.f32 %v287, %v288
        %v292 = vrot.slane %v289, 4
        %v293 = vsel %vm275, %v282, %v292
        %v295 = vsub.f32 %v267, %v293
        %v296 = vmul.f32 %v295, 1.442695
        %v297 = vpow.pop %v296
        %299 = vst [vmem:[#allocation1] ss:$2 sm:$0xff] %v297
        %v300 = vld.sshfl [vmem:[#allocation1] sm:$0xff pattern:$0x75316420]
        %v301 = vld.sshfl [vmem:[#allocation1 + $0x8] sm:$0xff pattern:$0x75316420]
        %v304 = vsel %vm275, %v300, 0.0
        %v305 = vrot.slane %v304, 4
        %v306 = vadd.f32 %v304, %v305
        %v307 = vrot.slane %v306, 2
        %v308 = vadd.f32 %v306, %v307
        %v309 = vrot.slane %v308, 1
        %v310 = vadd.f32 %v308, %v309
        %v311 = vsel %vm275, %v301, 0.0
        %v312 = vrot.slane %v311, 4
        %v313 = vadd.f32 %v311, %v312
        %v314 = vrot.slane %v313, 2
        %v315 = vadd.f32 %v313, %v314
        %v316 = vrot.slane %v315, 1
        %v317 = vadd.f32 %v315, %v316
        %v318 = vlog2.pop %v310
        %v319 = vmul.f32 %v318, 0.6931472
        %v320 = vlog2.pop %v317
        %v321 = vmul.f32 %v320, 0.6931472
        %v322 = vadd.f32 %v319, %v282
        %v323 = vadd.f32 %v321, %v289
        %v326 = vrot.slane %v323, 4
        %v327 = vsel %vm275, %v322, %v326
        %v329 = vsub.f32 %v267, %v327
        %v330 = vlaneseq
        %v331 = vshrl.u32 %v330, 7
        %v332 = vperm.slane %v268, 0
        %v333 = vperm.slane %v268, 1
        %vm334 = vcmp.eq.s32.totalorder %v331, %v332
        %vm335 = vcmp.eq.s32.totalorder %v331, %v333
        %v336 = vsel %vm334, 1, 0
        %v337 = vsel %vm335, 1, 0
        %v338 = vcvt.s32.f32 %v336
        %v339 = vcvt.s32.f32 %v337
        %v342 = vrot.slane %v339, 4
        %v343 = vsel %vm275, %v338, %v342
        %v345 = vmul.f32 %v329, %v343
        %347 = vst [vmem:[#allocation1] ss:$2 sm:$0xff] %v345
        %v348 = vld.sshfl [vmem:[#allocation1] sm:$0xff pattern:$0x75316420]
        %v349 = vld.sshfl [vmem:[#allocation1 + $0x8] sm:$0xff pattern:$0x75316420]
        %v352 = vsel %vm275, %v348, 0.0
        %v353 = vrot.slane %v352, 4
        %v354 = vadd.f32 %v352, %v353
        %v355 = vrot.slane %v354, 2
        %v356 = vadd.f32 %v354, %v355
        %v357 = vrot.slane %v356, 1
        %v358 = vadd.f32 %v356, %v357
        %v359 = vsel %vm275, %v349, 0.0
        %v360 = vrot.slane %v359, 4
        %v361 = vadd.f32 %v359, %v360
        %v362 = vrot.slane %v361, 2
        %v363 = vadd.f32 %v361, %v362
        %v364 = vrot.slane %v363, 1
        %v365 = vadd.f32 %v363, %v364
        %v366 = vsub.f32 0.0, %v358
        %v367 = vsub.f32 0.0, %v365
        %vm368 = vcmp.ne.s32.totalorder %v268, 255
        %v369 = vsel %vm368, 1, 0
        %v370 = vcvt.s32.f32 %v369
        %v371 = vld [vmem:[#allocation2] sm:$0x3]
        %v373 = vperm.slane %v370, 0
        %v374 = vperm.slane %v370, 1
        %v377 = vmul.f32 %v366, %v373
        %v378 = vmul.f32 %v367, %v374
        %v381 = vrot.slane %v378, 7
        %vm382 = vcmask 1040384
        %v383 = vsel %vm382, %v377, %v381
        %v385 = vadd.f32 %v371, %v383
        %v386 = vlaneseq
        %vm387 = vcmp.ge.s32.totalorder %v386, 0
        %vm388 = vcmp.lt.s32.totalorder %v386, 256
        %vm389 = vmand %vm387, %vm388
        %390 = vst.msk [vmem:[#allocation2] sm:$0x3] %vm389, %v385
        %v391 = vld [vmem:[#allocation3] sm:$0x3]
        %v392 = vadd.f32 %v391, %v370
        %393 = vst.msk [vmem:[#allocation3] sm:$0x3] %vm389, %v392
        // Predicated region
        $region41: #{tpu_custom_call.1} parent=27 // pred_check
          %p394 = pneg %p257
        $region42: #{tpu_custom_call.1} parent=27 // pred_check_branch
          %396 = sbr.rel (%p394) target = $region44
        $region43: #{tpu_custom_call.1} parent=27 // pred_region
          %v397 = vld [vmem:[#allocation2] sm:$0x3]
          %v399 = vperm.slane %v397, 0
          %v400 = vperm.slane %v397, 1
          %v403 = vsel %vm382, %v399, 0.0
          %v404 = vsel %vm382, %v400, 0.0
          %v405 = vadd.f32 %v403, %v404
          %406 = vadd.xlane.f32.xlu0 %v405
          %v407 = vpop.xlane.xlu0 %406
          %vm408 = vcmask 0
          %409 = vst.msk [vmem:[%s253] sm:$0x1] %vm408, %v407
          %v410 = vld [vmem:[#allocation3] sm:$0x3]
          %v412 = vperm.slane %v410, 0
          %v413 = vperm.slane %v410, 1
          %v416 = vsel %vm382, %v412, 0.0
          %v417 = vsel %vm382, %v413, 0.0
          %v418 = vadd.f32 %v416, %v417
          %419 = vadd.xlane.f32.xlu0 %v418
          %v420 = vpop.xlane.xlu0 %419
          %421 = vst.msk [vmem:[%s256] sm:$0x1] %vm408, %v420
        $region44: #{tpu_custom_call.1} parent=27 // pred_fallthru
          _
        %p422 = scmp.lt.s32.totalorder %s25, 1
        %s423 = scalar_select %p422, %s25, 1
        %s424 = scalar_lea.vmem %s2, %s423
        %p425 = scmp.lt.s32.totalorder %s25, 1
        %s426 = scalar_select %p425, %s25, 1
        %s427 = scalar_lea.vmem %s3, %s426
        // Predicated region
        $region45: #{tpu_custom_call.1} parent=27 // pred_check
          %p428 = pneg %p107
        $region46: #{tpu_custom_call.1} parent=27 // pred_check_branch
          %430 = sbr.rel (%p428) target = $region48
        $region47: #{tpu_custom_call.1} parent=27 // pred_region
          _
        $region48: #{tpu_custom_call.1} parent=27 // pred_fallthru
          _
        // Predicated region
        $region49: #{tpu_custom_call.1} parent=27 // pred_check
          %p431 = pneg %p133
        $region50: #{tpu_custom_call.1} parent=27 // pred_check_branch
          %433 = sbr.rel (%p431) target = $region52
        $region51: #{tpu_custom_call.1} parent=27 // pred_region
          _
        $region52: #{tpu_custom_call.1} parent=27 // pred_fallthru
          _
      $region28: #{tpu_custom_call.1} parent=5 // pred_fallthru
        _
      %p434 = scmp.le.s32.totalorder 2, %s16
      // Predicated region
      $region53: #{tpu_custom_call.1} parent=5 // pred_check
        %p435 = pneg %p434
      $region54: #{tpu_custom_call.1} parent=5 // pred_check_branch
        %437 = sbr.rel (%p435) target = $region56
      $region55: #{tpu_custom_call.1} parent=5 // pred_region
        %s438 = ssub.s32 %s16, 2
        // Predicated region
        $region57: #{tpu_custom_call.1} parent=55 // pred_check
          %p439 = pneg %p113
        $region58: #{tpu_custom_call.1} parent=55 // pred_check_branch
          %441 = sbr.rel (%p439) target = $region60
        $region59: #{tpu_custom_call.1} parent=55 // pred_region
          %p442 = scmp.lt.s32.totalorder %s27, 1
          %s443 = scalar_select %p442, %s27, 1
          %s444 = scalar_lea.vmem %s2, %s443
        $region60: #{tpu_custom_call.1} parent=55 // pred_fallthru
          _
        // Predicated region
        $region61: #{tpu_custom_call.1} parent=55 // pred_check
          %p445 = pneg %p139
        $region62: #{tpu_custom_call.1} parent=55 // pred_check_branch
          %447 = sbr.rel (%p445) target = $region64
        $region63: #{tpu_custom_call.1} parent=55 // pred_region
          %p448 = scmp.lt.s32.totalorder %s27, 1
          %s449 = scalar_select %p448, %s27, 1
          %s450 = scalar_lea.vmem %s3, %s449
        $region64: #{tpu_custom_call.1} parent=55 // pred_fallthru
          _
      $region56: #{tpu_custom_call.1} parent=5 // pred_fallthru
        _
    $region6: #{tpu_custom_call.1} parent=1 // loop_footer
      %s20 = sadd.s32 1, %s16
    $region7: #{tpu_custom_call.1} parent=1 // loop_footer_branch
      %15 = sbr.rel target = $region3
    $region8: #{tpu_custom_call.1} parent=1 // loop_exit
      _
    %451 = vsyncpa [#allocation5], 1
    %s452 = scalar_lea.sflag [#allocation5], 1
    %453 = vsyncpa %s452, 1
    %454 = vsyncpa [#allocation7], 1
    %s455 = scalar_lea.sflag [#allocation7], 1
    %456 = vsyncpa %s455, 1

</llo_original>
